<compile_context>
chip_gen: v5e
topology: v5e:2x2
jax: 0.10.0
libtpu: 0.0.40
codegen_flags: <defaults>
</compile_context>

<pallas_src>
import jax
import jax.numpy as jnp
from jax.experimental import pallas as pl
from jax.experimental.pallas import tpu as pltpu

LANES = 128      # vreg lane width: the batch lives on the lane axis
SUBLANES = 8     # sublane quantum: row counts are kept multiples of 8
ROW_CAP = 2048   # max rows per grid step: 2048*128 = 256K samples/step.
                 # VMEM/step (double-buffered): (2 in + 1 out)*2048*128*4B*2 ~= 6 MiB.


def _round_up(n, m):
    return ((n + m - 1) // m) * m


def _pick_tile(rows):
    """Choose (rows_per_step, padded_rows) for a batch spanning `rows` sublane-rows."""
    rows8 = _round_up(max(int(rows), 1), SUBLANES)
    if rows8 <= SUBLANES:
        tr = rows8                      # tiny batch: single grid step
    else:
        # Aim for >= 2 grid steps (v7x shards the "parallel" axis over its two
        # TensorCores), but cap the per-step tile at the VMEM budget.
        tr = min(ROW_CAP, _round_up(pl.cdiv(rows8, 2), SUBLANES))
    return tr, _round_up(rows8, tr)


def _pack_params(w, b):
    # [w0, w1, bias] packed into one tiny SMEM-resident vector.
    return jnp.concatenate(
        [w.reshape(-1).astype(jnp.float32), b.reshape(-1).astype(jnp.float32)]
    )  # (3,)


def _net_kernel(params_ref, x0_ref, x1_ref, o_ref):
    # params_ref: SMEM (3,) f32 = [w0, w1, b]
    # x0_ref/x1_ref: VMEM (tr, 128) dense slabs (one sample per lane)
    # o_ref:         VMEM (tr, 128)
    w0 = params_ref[0]
    w1 = params_ref[1]
    b = params_ref[2]
    z = x0_ref[...] * w0 + x1_ref[...] * w1 + b          # pure VPU, no MXU
    # sigmoid(z) = 0.5 * (tanh(z / 2) + 1): a single EUP push per vreg.
    o_ref[...] = (0.5 * jnp.tanh(0.5 * z) + 0.5).astype(o_ref.dtype)


def _net_pallas(params, x0, x1, tr):
    rows = x0.shape[0]
    assert rows % tr == 0 and tr % SUBLANES == 0
    n = rows * LANES
    cost = pl.CostEstimate(
        flops=5 * n,            # 2 mul + 2 add + 1 affine per sample
        transcendentals=n,      # 1 tanh per sample
        bytes_accessed=12 * n,  # 8 B in + 4 B out per sample
    )
    return pl.pallas_call(
        _net_kernel,
        out_shape=jax.ShapeDtypeStruct((rows, LANES), jnp.float32),
        grid_spec=pltpu.PrefetchScalarGridSpec(
            num_scalar_prefetch=0,
            grid=(rows // tr,),
            in_specs=[
                # Scalar parameters: whole (3,) array in SMEM, no tiling / DMA pipeline.
                pl.BlockSpec(memory_space=pltpu.MemorySpace.SMEM),
                pl.BlockSpec((tr, LANES), lambda i: (i, 0)),
                pl.BlockSpec((tr, LANES), lambda i: (i, 0)),
            ],
            out_specs=pl.BlockSpec((tr, LANES), lambda i: (i, 0)),
        ),
        compiler_params=pltpu.CompilerParams(
            # Batch tiles are independent -> v7x's two TensorCores split the grid.
            dimension_semantics=("parallel",),
            # Working set is ~6 MiB at ROW_CAP; stays under every generation's
            # scoped default (v5e 16 MiB, v6e 32 MiB, v7x 32 MiB of 64 MiB).
            vmem_limit_bytes=32 * 1024 * 1024,
        ),
        cost_estimate=cost,
    )(params, x0, x1)


def net_forward_channel_major(x0, x1, w, b):
    """Zero-relayout fast path: x0, x1 are dense (rows, 128) f32 slabs holding
    feature 0 / feature 1 of 128*rows samples; returns sigmoid outputs with the
    same (rows, 128) layout."""
    rows = x0.shape[0]
    tr, rows_pad = _pick_tile(rows)
    if rows_pad != rows:
        x0 = jnp.zeros((rows_pad, LANES), jnp.float32).at[:rows].set(x0)
        x1 = jnp.zeros((rows_pad, LANES), jnp.float32).at[:rows].set(x1)
    y = _net_pallas(_pack_params(w, b), x0, x1, tr)
    return y[:rows]


def net_forward(x, w, b):
    """PyTorch-equivalent interface.
    x: [B, 2] f32, w: [2, 1] f32 (transposed nn.Linear weight), b: [1] f32 -> [B, 1]."""
    B = x.shape[0]
    tr, rows_pad = _pick_tile(pl.cdiv(B, LANES))
    n_pad = rows_pad * LANES
    # Channel-major relayout + pad (one fused XLA op). This is the only extra
    # HBM round trip left; callers that can keep activations channel-major
    # should call net_forward_channel_major and skip it entirely.
    xt = jnp.zeros((2, n_pad), jnp.float32).at[:, :B].set(
        jnp.transpose(x).astype(jnp.float32)
    )
    x0 = xt[0].reshape(rows_pad, LANES)
    x1 = xt[1].reshape(rows_pad, LANES)
    y = _net_pallas(_pack_params(w, b), x0, x1, tr)      # (rows_pad, 128)
    # Padded lanes compute sigmoid(b) and are discarded here.
    return y.reshape(n_pad)[:B].reshape(B, 1)


def reference_forward(x, w, b):
    return jax.nn.sigmoid(x @ w + b)


if __name__ == "__main__":
    key = jax.random.PRNGKey(0)
    kx, kw, kb = jax.random.split(key, 3)

    B = 8  # small batch, e.g. the 4 XOR points repeated twice
    x = jax.random.normal(kx, (B, 2), dtype=jnp.float32)

    # Deterministic init mimicking nn.Linear's uniform(-1/sqrt(in), 1/sqrt(in)).
    bound = 1.0 / jnp.sqrt(2.0)
    w = jax.random.uniform(kw, (2, 1), minval=-bound, maxval=bound, dtype=jnp.float32)
    b = jax.random.uniform(kb, (1,), minval=-bound, maxval=bound, dtype=jnp.float32)

    y = net_forward(x, w, b)
    jax.block_until_ready(y)

    y_ref = reference_forward(x, w, b)
    assert y.shape == (B, 1)
    assert jnp.allclose(y, y_ref, atol=1e-5, rtol=1e-5)

    print("KERNEL_OK")
</pallas_src>

<mosaic_0001>
module attributes {stable_mosaic.version = 11 : i64} {
  func.func @_net_kernel(%arg0: i32, %arg1: memref<3xf32, #tpu.memory_space<smem>>, %arg2: memref<8x128xf32, #tpu.memory_space<vmem>>, %arg3: memref<8x128xf32, #tpu.memory_space<vmem>>, %arg4: memref<8x128xf32, #tpu.memory_space<vmem>>) attributes {dimension_semantics = [#tpu.dimension_semantics<parallel>], iteration_bounds = array<i64: 1>, scalar_prefetch = 0 : i64, scratch_operands = 0 : i64, tpu.core_type = #tpu.core_type<tc>, window_params = [{transform_indices = @transform_0, window_bounds = array<i64: 3>}, {transform_indices = @transform_1, window_bounds = array<i64: 8, 128>}, {transform_indices = @transform_2, window_bounds = array<i64: 8, 128>}, {transform_indices = @transform_3, window_bounds = array<i64: 8, 128>}]} {
    %c0 = arith.constant 0 : index
    %0 = memref.load %arg1[%c0] : memref<3xf32, #tpu.memory_space<smem>>
    %c1 = arith.constant 1 : index
    %1 = memref.load %arg1[%c1] : memref<3xf32, #tpu.memory_space<smem>>
    %c2 = arith.constant 2 : index
    %2 = memref.load %arg1[%c2] : memref<3xf32, #tpu.memory_space<smem>>
    %c0_0 = arith.constant 0 : index
    %c0_1 = arith.constant 0 : index
    %3 = vector.load %arg2[%c0_0, %c0_1] : memref<8x128xf32, #tpu.memory_space<vmem>>, vector<8x128xf32>
    %4 = vector.broadcast %0 : f32 to vector<8x128xf32>
    %5 = arith.mulf %3, %4 : vector<8x128xf32>
    %c0_2 = arith.constant 0 : index
    %c0_3 = arith.constant 0 : index
    %6 = vector.load %arg3[%c0_2, %c0_3] : memref<8x128xf32, #tpu.memory_space<vmem>>, vector<8x128xf32>
    %7 = vector.broadcast %1 : f32 to vector<8x128xf32>
    %8 = arith.mulf %6, %7 : vector<8x128xf32>
    %9 = arith.addf %5, %8 : vector<8x128xf32>
    %10 = vector.broadcast %2 : f32 to vector<8x128xf32>
    %11 = arith.addf %9, %10 : vector<8x128xf32>
    %cst = arith.constant 5.000000e-01 : f32
    %12 = vector.broadcast %cst : f32 to vector<8x128xf32>
    %13 = arith.mulf %12, %11 : vector<8x128xf32>
    %14 = math.tanh %13 : vector<8x128xf32>
    %cst_4 = arith.constant 5.000000e-01 : f32
    %15 = vector.broadcast %cst_4 : f32 to vector<8x128xf32>
    %16 = arith.mulf %15, %14 : vector<8x128xf32>
    %cst_5 = arith.constant 5.000000e-01 : f32
    %17 = vector.broadcast %cst_5 : f32 to vector<8x128xf32>
    %18 = arith.addf %16, %17 : vector<8x128xf32>
    %c0_6 = arith.constant 0 : index
    %c0_7 = arith.constant 0 : index
    %19 = vector.load %arg4[%c0_6, %c0_7] : memref<8x128xf32, #tpu.memory_space<vmem>>, vector<8x128xf32>
    tpu.vector_store %arg4[%c0_6, %c0_7], %18 {strides = array<i32>} : memref<8x128xf32, #tpu.memory_space<vmem>>, vector<8x128xf32>,
    return
  }
  func.func @transform_0(%arg0: i32) -> i32 {
    %c0_i32 = arith.constant 0 : i32
    %c0_i32_0 = arith.constant 0 : i32
    return %c0_i32 : i32
  }
  func.func @transform_1(%arg0: i32) -> (i32, i32) {
    %c0_i32 = arith.constant 0 : i32
    %c0_i32_0 = arith.constant 0 : i32
    return %arg0, %c0_i32 : i32, i32
  }
  func.func @transform_2(%arg0: i32) -> (i32, i32) {
    %c0_i32 = arith.constant 0 : i32
    %c0_i32_0 = arith.constant 0 : i32
    return %arg0, %c0_i32 : i32, i32
  }
  func.func @transform_3(%arg0: i32) -> (i32, i32) {
    %c0_i32 = arith.constant 0 : i32
    %c0_i32_0 = arith.constant 0 : i32
    return %arg0, %c0_i32 : i32, i32
  }
}

</mosaic_0001>

<llo_original>
// kernel: tpu_custom_call.1
$region0: #{tpu_custom_call.1}
  #allocation0 [shape = 'u32[]', space=smem, size = 0x4, offset = 0x4, fixed_abs, tag = 'smem constant byte address 0x4 - core index']
  #allocation1 [shape = 'u32[72,128]{1,0:T(1,128)}', space=vmem, size = 0x9000, scoped, tag = 'internal scratch']
  %s0 = inlined_call_operand.hbm [shape: f32[3], index: 0, kind: input, shape index: {}]
  %s1 = inlined_call_operand.hbm [shape: f32[8,128], index: 1, kind: input, shape index: {}]
  %s2 = inlined_call_operand.hbm [shape: f32[8,128], index: 2, kind: input, shape index: {}]
  %s3 = inlined_call_operand.hbm [shape: f32[8,128], index: 3, kind: output, shape index: {}]
  %s4 = sld [smem:[#allocation0]]
  $region34: #{tpu_custom_call.1} parent=0
    _
  %s6 = ssub.s32 1, %s4
  %s7 = scalar_select 0, %s6, %s4
  $region1: #{tpu_custom_call.1} parent=0
    #allocation2 [shape = 'u8[512]{0}', space=smem, size = 0x200, scoped, tag = 'input window, operand 0, single buffered']
    #allocation3 [shape = 's32[1]{0}', space=sflag, size = 0x4, scoped, tag = 'scoped memory for tpu_custom_call.1']
    #allocation4 [shape = 's32[1]{0}', space=sflag, size = 0x4, scoped, tag = 'scoped memory for tpu_custom_call.1']
    #allocation5 [shape = 's32[1]{0}', space=sflag, size = 0x4, scoped, tag = 'scoped memory for tpu_custom_call.1']
    #allocation6 [shape = 'u8[4096]{0}', space=vmem, size = 0x1000, scoped, tag = 'input window, operand 1, single buffered']
    #allocation7 [shape = 'u8[4096]{0}', space=vmem, size = 0x1000, scoped, tag = 'input window, operand 2, single buffered']
    #allocation8 [shape = 's32[1]{0}', space=sflag, size = 0x4, scoped, tag = 'scoped memory for tpu_custom_call.1']
    #allocation9 [shape = 'u8[4096]{0}', space=vmem, size = 0x1000, scoped, tag = 'output window, operand 0, single buffered']
    %8 = vsyncpa [#allocation5], 0
    %9 = vsyncpa [#allocation3], 0
    %10 = vsyncpa [#allocation8], 0
    %11 = vsyncpa [#allocation4], 0
    // Predicated region
    $region2: #{tpu_custom_call.1} parent=1 // pred_check
      _
    $region3: #{tpu_custom_call.1} parent=1 // pred_check_branch
      %13 = sbr.rel (0) target = $region5
    $region4: #{tpu_custom_call.1} parent=1 // pred_region
      %15 = vsyncadd [#allocation5], 0
      %s17 = sshll.u32 %s0, 4
      %s18 = int_to_ptr.hbm [resolvable:$true] %s17
      %20 = dma.hbm_to_smem %s18, 16, [#allocation2], [#allocation5]
    $region5: #{tpu_custom_call.1} parent=1 // pred_fallthru
      _
    // Predicated region
    $region6: #{tpu_custom_call.1} parent=1 // pred_check
      _
    $region7: #{tpu_custom_call.1} parent=1 // pred_check_branch
      %22 = sbr.rel (0) target = $region9
    $region8: #{tpu_custom_call.1} parent=1 // pred_region
      %24 = vsyncadd [#allocation3], 0
      %s26 = sshll.u32 %s1, 4
      %s27 = int_to_ptr.hbm [resolvable:$true] %s26
      %s28 = sshll.u32 [#allocation6], 4
      %s29 = int_to_ptr.vmem [resolvable:$true] %s28
      %31 = dma.hbm_to_vmem [thread:$0]  %s27, 128, %s29, [#allocation3]
    $region9: #{tpu_custom_call.1} parent=1 // pred_fallthru
      _
    // Predicated region
    $region10: #{tpu_custom_call.1} parent=1 // pred_check
      _
    $region11: #{tpu_custom_call.1} parent=1 // pred_check_branch
      %33 = sbr.rel (0) target = $region13
    $region12: #{tpu_custom_call.1} parent=1 // pred_region
      %35 = vsyncadd [#allocation8], 0
      %s37 = sshll.u32 %s2, 4
      %s38 = int_to_ptr.hbm [resolvable:$true] %s37
      %s39 = sshll.u32 [#allocation7], 4
      %s40 = int_to_ptr.vmem [resolvable:$true] %s39
      %42 = dma.hbm_to_vmem [thread:$0]  %s38, 128, %s40, [#allocation8]
    $region13: #{tpu_custom_call.1} parent=1 // pred_fallthru
      _
    // Predicated region
    $region14: #{tpu_custom_call.1} parent=1 // pred_check
      _
    $region15: #{tpu_custom_call.1} parent=1 // pred_check_branch
      %44 = sbr.rel (0) target = $region17
    $region16: #{tpu_custom_call.1} parent=1 // pred_region
      %46 = dma.done [#allocation5], 16
    $region17: #{tpu_custom_call.1} parent=1 // pred_fallthru
      _
    // Predicated region
    $region18: #{tpu_custom_call.1} parent=1 // pred_check
      _
    $region19: #{tpu_custom_call.1} parent=1 // pred_check_branch
      %48 = sbr.rel (0) target = $region21
    $region20: #{tpu_custom_call.1} parent=1 // pred_region
      %50 = dma.done [#allocation3], 128
    $region21: #{tpu_custom_call.1} parent=1 // pred_fallthru
      _
    // Predicated region
    $region22: #{tpu_custom_call.1} parent=1 // pred_check
      _
    $region23: #{tpu_custom_call.1} parent=1 // pred_check_branch
      %52 = sbr.rel (0) target = $region25
    $region24: #{tpu_custom_call.1} parent=1 // pred_region
      %54 = dma.done [#allocation8], 128
    $region25: #{tpu_custom_call.1} parent=1 // pred_fallthru
      _
    %55 = sfence
    %s56 = sld [smem:[#allocation2]]
    %s57 = sld [smem:[#allocation2 + $0x1]]
    %s58 = sld [smem:[#allocation2 + $0x2]]
    %v59 = vld [vmem:[#allocation6] sm:$0xff]
    %v60 = vstv %s56
    %v61 = vmul.f32 %v59, %v60
    %v62 = vld [vmem:[#allocation7] sm:$0xff]
    %v63 = vstv %s57
    %v64 = vmul.f32 %v62, %v63
    %v65 = vadd.f32 %v61, %v64
    %v66 = vstv %s58
    %v67 = vadd.f32 %v65, %v66
    %v68 = vmul.f32 %v67, 0.5
    %v69 = vtanh.pop %v68
    %v70 = vmul.f32 %v69, 0.5
    %v71 = vadd.f32 %v70, 0.5
    %72 = vst [vmem:[#allocation9] sm:$0xff] %v71
    // Predicated region
    $region26: #{tpu_custom_call.1} parent=1 // pred_check
      _
    $region27: #{tpu_custom_call.1} parent=1 // pred_check_branch
      %74 = sbr.rel (0) target = $region29
    $region28: #{tpu_custom_call.1} parent=1 // pred_region
      %76 = vsyncadd [#allocation4], 0
      %s78 = sshll.u32 [#allocation9], 4
      %s79 = int_to_ptr.vmem [resolvable:$true] %s78
      %s80 = sshll.u32 %s3, 4
      %s81 = int_to_ptr.hbm [resolvable:$true] %s80
      %83 = dma.vmem_to_hbm [thread:$0]  %s79, 128, %s81, [#allocation4]
    $region29: #{tpu_custom_call.1} parent=1 // pred_fallthru
      _
    // Predicated region
    $region30: #{tpu_custom_call.1} parent=1 // pred_check
      _
    $region31: #{tpu_custom_call.1} parent=1 // pred_check_branch
      %85 = sbr.rel (0) target = $region33
    $region32: #{tpu_custom_call.1} parent=1 // pred_region
      %87 = dma.done [#allocation4], 128
    $region33: #{tpu_custom_call.1} parent=1 // pred_fallthru
      _
    %88 = vsyncpa [#allocation3], 1
    %89 = vsyncpa [#allocation8], 1
    %90 = vsyncpa [#allocation4], 1
    %91 = vsyncpa [#allocation5], 1

</llo_original>
